<compile_context>
chip_gen: v5e
topology: v5e:2x2
jax: 0.10.0
libtpu: 0.0.40
codegen_flags: <defaults>
</compile_context>

<pallas_src>
import functools
import math

import jax
import jax.numpy as jnp
from jax import lax
from jax.experimental import pallas as pl
from jax.experimental.pallas import tpu as pltpu


def _sdpa_kernel(*refs, scale, has_mask, has_edge):
    it = iter(refs)
    q_ref = next(it)                      # (1, 1, block_q, d_k)
    k_ref = next(it)                      # (1, 1, S, d_k)
    v_ref = next(it)                      # (1, 1, S, d_k)
    mask_ref = next(it) if has_mask else None   # (1, block_q, S) int8
    edge_ref = next(it) if has_edge else None   # (1, block_q, S) native dtype
    ctx_ref = next(it)                    # (1, 1, block_q, d_k)
    attn_ref = next(it)                   # (1, 1, block_q, S)
    scores_ref = next(it)                 # (1, 1, block_q, S)

    # Fold the 1/sqrt(d_model) scale into the small Q tile (cheaper by ~S/d_k
    # than scaling the (block_q, S) scores; stays in the MXU input dtype).
    q = q_ref[0, 0] * jnp.asarray(scale, dtype=q_ref.dtype)
    k = k_ref[0, 0]
    v = v_ref[0, 0]

    # Q K^T on the MXU without materializing K^T: contract the d_k axes.
    s = lax.dot_general(q, k, (((1,), (1,)), ((), ())),
                        preferred_element_type=jnp.float32)
    if has_edge:
        s = s + edge_ref[0].astype(jnp.float32)
    if has_mask:
        s = jnp.where(mask_ref[0] != 0, jnp.float32(-1000000000.0), s)
    scores_ref[0, 0] = s.astype(scores_ref.dtype)

    # Row softmax over the key axis.  Exact reciprocal: the kernel is
    # HBM-bound, so the exact EUP divide is free and matches the reference.
    m = jnp.max(s, axis=-1, keepdims=True)
    p = jnp.exp(s - m)
    attn = p * pl.reciprocal(jnp.sum(p, axis=-1, keepdims=True), approx=False)
    attn_ref[0, 0] = attn.astype(attn_ref.dtype)

    # attn @ V at the input dtype's MXU rate, f32 accumulation.
    ctx = jnp.dot(attn.astype(v.dtype), v, preferred_element_type=jnp.float32)
    ctx_ref[0, 0] = ctx.astype(ctx_ref.dtype)


def _per_step_vmem_bytes(block_q, S, d_k, q_isz, kv_isz, mask_isz, edge_isz,
                         ctx_isz, scores_isz):
    """Dtype-aware VMEM estimate for one grid step (blocks double-buffered
    by the pipeline) plus the live f32 intermediates inside the kernel."""
    blocks = (block_q * d_k * q_isz                       # Q tile
              + 2 * S * d_k * kv_isz                      # K + V slabs
              + block_q * S * (mask_isz + edge_isz)       # mask / edge tiles
              + block_q * d_k * ctx_isz                   # context tile
              + 2 * block_q * S * scores_isz)             # attn + scores tiles
    intermediates = 3 * block_q * S * 4                   # f32 s / p / attn
    return 2 * blocks + intermediates


def _default_budgets():
    """(block-selection budget, scoped-VMEM cap), sized from physical VMEM."""
    try:
        cap = pltpu.get_tpu_info().vmem_capacity_bytes
    except Exception:  # noqa: BLE001 - fall back to the most conservative chip
        cap = 64 << 20
    if cap >= (100 << 20):            # v5e / v6e: 128 MiB physical VMEM
        return 64 << 20, 96 << 20
    return 24 << 20, 40 << 20         # v7x: 64 MiB physical VMEM per TC


def _pick_block_q(S, d_k, itemsizes, budget_bytes, sublane_multiple):
    """Largest legal query tile whose per-step VMEM fits the budget."""
    cands = [S] + [bq for bq in (1024, 512, 256, 128, 64, 32, 16, 8)
                   if bq < S and S % bq == 0 and bq % sublane_multiple == 0]
    for bq in cands:
        if _per_step_vmem_bytes(bq, S, d_k, *itemsizes) <= budget_bytes:
            return bq
    return cands[-1]


def sdpa_forward(Q, K, V, attn_mask=None, edge_encoding=None, *,
                 d_model=64, block_q=None, scores_dtype=None, interpret=False):
    """Pallas implementation of ScaledDotProductAttention.forward.

    Q, K, V: (B, n_heads, S, d_k).  attn_mask (bool, True == masked) and
    edge_encoding: (B, S, S), broadcast over heads; either may be None.
    Returns (context, attn, scores).  `scores_dtype` optionally lowers the
    precision of the (B,H,S,S) outputs (e.g. bf16) to halve HBM write traffic.
    """
    B, H, S, d_k = Q.shape
    scale = 1.0 / math.sqrt(d_model)
    dtype = Q.dtype
    scores_dtype = jnp.dtype(dtype if scores_dtype is None else scores_dtype)

    has_mask = attn_mask is not None
    has_edge = edge_encoding is not None

    q_isz = jnp.dtype(Q.dtype).itemsize
    kv_isz = jnp.dtype(K.dtype).itemsize
    mask_isz = 1 if has_mask else 0
    edge_isz = jnp.dtype(edge_encoding.dtype).itemsize if has_edge else 0
    ctx_isz = jnp.dtype(dtype).itemsize
    sc_isz = scores_dtype.itemsize
    itemsizes = (q_isz, kv_isz, mask_isz, edge_isz, ctx_isz, sc_isz)

    budget, vmem_cap = _default_budgets()
    if block_q is None:
        any_16bit = (min(q_isz, kv_isz, ctx_isz, sc_isz) <= 2
                     or (has_edge and edge_isz <= 2))
        sublane_multiple = 16 if any_16bit else 8
        block_q = _pick_block_q(S, d_k, itemsizes, budget, sublane_multiple)
    assert S % block_q == 0, "query tile must divide S"
    nq = S // block_q

    kernel = functools.partial(_sdpa_kernel, scale=scale,
                               has_mask=has_mask, has_edge=has_edge)

    # grid = (batch, query-tiles, heads); heads innermost so the (block_q, S)
    # mask/edge blocks stay resident (not re-DMA'd) across the head loop.
    q_spec  = pl.BlockSpec((1, 1, block_q, d_k), lambda b, i, h: (b, h, i, 0))
    kv_spec = pl.BlockSpec((1, 1, S, d_k),       lambda b, i, h: (b, h, 0, 0))
    me_spec = pl.BlockSpec((1, block_q, S),      lambda b, i, h: (b, i, 0))
    ss_spec = pl.BlockSpec((1, 1, block_q, S),   lambda b, i, h: (b, h, i, 0))

    inputs = [Q, K, V]
    in_specs = [q_spec, kv_spec, kv_spec]
    if has_mask:
        inputs.append(attn_mask.astype(jnp.int8))   # 1 B/elem of HBM reads
        in_specs.append(me_spec)
    if has_edge:
        inputs.append(edge_encoding)                 # native dtype, no upcast
        in_specs.append(me_spec)

    est = _per_step_vmem_bytes(block_q, S, d_k, *itemsizes)
    vmem_limit = int(min(max(est + (4 << 20), 16 << 20), vmem_cap))

    ctx, attn, scores = pl.pallas_call(
        kernel,
        out_shape=(jax.ShapeDtypeStruct((B, H, S, d_k), dtype),
                   jax.ShapeDtypeStruct((B, H, S, S), scores_dtype),
                   jax.ShapeDtypeStruct((B, H, S, S), scores_dtype)),
        grid_spec=pltpu.PrefetchScalarGridSpec(
            num_scalar_prefetch=0,
            grid=(B, nq, H),
            in_specs=in_specs,
            out_specs=[q_spec, ss_spec, ss_spec],
        ),
        compiler_params=pltpu.CompilerParams(
            # Head axis "arbitrary": megacore split lands on B / q-tiles, so
            # the mask/edge residency across consecutive heads survives.
            dimension_semantics=("parallel", "parallel", "arbitrary"),
            vmem_limit_bytes=vmem_limit),
        interpret=interpret,
    )(*inputs)
    return ctx, attn, scores


def sdpa_reference(Q, K, V, attn_mask, edge_encoding, d_model):
    """Pure-JAX reference mirroring the PyTorch forward."""
    scores = jnp.einsum('bhqd,bhkd->bhqk', Q, K) / math.sqrt(d_model)
    if edge_encoding is not None:
        scores = scores + edge_encoding[:, None, :, :]
    if attn_mask is not None:
        scores = jnp.where(attn_mask[:, None, :, :], -1000000000.0, scores)
    attn = jax.nn.softmax(scores, axis=-1)
    context = jnp.einsum('bhqk,bhkd->bhqd', attn, V)
    return context, attn, scores


if __name__ == "__main__":
    # Small shapes consistent with the module (d_model controls only the
    # 1/sqrt(d_model) scale).
    B, n_heads, S, d_k = 2, 4, 16, 16
    d_model = 64

    key = jax.random.PRNGKey(0)
    ks = jax.random.split(key, 5)
    Q = jax.random.normal(ks[0], (B, n_heads, S, d_k), jnp.float32)
    K = jax.random.normal(ks[1], (B, n_heads, S, d_k), jnp.float32)
    V = jax.random.normal(ks[2], (B, n_heads, S, d_k), jnp.float32)
    attn_mask = jax.random.bernoulli(ks[3], p=0.2, shape=(B, S, S))   # True == masked
    edge_encoding = 0.1 * jax.random.normal(ks[4], (B, S, S), jnp.float32)

    # Variant 1: mask + edge.
    ctx, attn, scores = sdpa_forward(Q, K, V, attn_mask, edge_encoding,
                                     d_model=d_model)
    ctx = jax.block_until_ready(ctx)
    attn = jax.block_until_ready(attn)
    scores = jax.block_until_ready(scores)

    ctx_r, attn_r, scores_r = sdpa_reference(Q, K, V, attn_mask,
                                             edge_encoding, d_model)
    assert jnp.allclose(scores, scores_r, atol=1e-3, rtol=1e-4), "scores mismatch"
    assert jnp.allclose(attn, attn_r, atol=1e-4, rtol=1e-4), "attn mismatch"
    assert jnp.allclose(ctx, ctx_r, atol=1e-3, rtol=1e-4), "context mismatch"

    # Variant 2: no mask, no edge (exercises the None fast path — no zeros
    # materialization, no mask/edge streams).
    ctx2, attn2, scores2 = sdpa_forward(Q, K, V, None, None, d_model=d_model)
    ctx2 = jax.block_until_ready(ctx2)
    ctx2_r, attn2_r, scores2_r = sdpa_reference(Q, K, V, None, None, d_model)
    assert jnp.allclose(scores2, scores2_r, atol=1e-3, rtol=1e-4), "scores2 mismatch"
    assert jnp.allclose(attn2, attn2_r, atol=1e-4, rtol=1e-4), "attn2 mismatch"
    assert jnp.allclose(ctx2, ctx2_r, atol=1e-3, rtol=1e-4), "context2 mismatch"

    print("KERNEL_OK")
</pallas_src>

<mosaic_0001>
module attributes {stable_mosaic.version = 11 : i64} {
  func.func @_sdpa_kernel(%arg0: i32, %arg1: i32, %arg2: i32, %arg3: memref<1x1x16x16xf32, #tpu.memory_space<vmem>>, %arg4: memref<1x1x16x16xf32, #tpu.memory_space<vmem>>, %arg5: memref<1x1x16x16xf32, #tpu.memory_space<vmem>>, %arg6: memref<1x16x16xi8, #tpu.memory_space<vmem>>, %arg7: memref<1x16x16xf32, #tpu.memory_space<vmem>>, %arg8: memref<1x1x16x16xf32, #tpu.memory_space<vmem>>, %arg9: memref<1x1x16x16xf32, #tpu.memory_space<vmem>>, %arg10: memref<1x1x16x16xf32, #tpu.memory_space<vmem>>) attributes {dimension_semantics = [#tpu.dimension_semantics<parallel>, #tpu.dimension_semantics<parallel>, #tpu.dimension_semantics<arbitrary>], iteration_bounds = array<i64: 2, 1, 4>, scalar_prefetch = 0 : i64, scratch_operands = 0 : i64, tpu.core_type = #tpu.core_type<tc>, window_params = [{transform_indices = @transform_0, window_bounds = array<i64: 1, 1, 16, 16>}, {transform_indices = @transform_1, window_bounds = array<i64: 1, 1, 16, 16>}, {transform_indices = @transform_2, window_bounds = array<i64: 1, 1, 16, 16>}, {transform_indices = @transform_3, window_bounds = array<i64: 1, 16, 16>}, {transform_indices = @transform_4, window_bounds = array<i64: 1, 16, 16>}, {transform_indices = @transform_5, window_bounds = array<i64: 1, 1, 16, 16>}, {transform_indices = @transform_6, window_bounds = array<i64: 1, 1, 16, 16>}, {transform_indices = @transform_7, window_bounds = array<i64: 1, 1, 16, 16>}]} {
    %c0 = arith.constant 0 : index
    %c0_0 = arith.constant 0 : index
    %c0_1 = arith.constant 0 : index
    %c0_2 = arith.constant 0 : index
    %0 = vector.load %arg3[%c0, %c0_0, %c0_1, %c0_2] : memref<1x1x16x16xf32, #tpu.memory_space<vmem>>, vector<1x1x16x16xf32>
    %1 = vector.shape_cast %0 : vector<1x1x16x16xf32> to vector<16x16xf32>
    %cst = arith.constant 1.250000e-01 : f32
    %2 = vector.broadcast %cst : f32 to vector<16x16xf32>
    %3 = arith.mulf %1, %2 : vector<16x16xf32>
    %c0_3 = arith.constant 0 : index
    %c0_4 = arith.constant 0 : index
    %c0_5 = arith.constant 0 : index
    %c0_6 = arith.constant 0 : index
    %4 = vector.load %arg4[%c0_3, %c0_4, %c0_5, %c0_6] : memref<1x1x16x16xf32, #tpu.memory_space<vmem>>, vector<1x1x16x16xf32>
    %5 = vector.shape_cast %4 : vector<1x1x16x16xf32> to vector<16x16xf32>
    %c0_7 = arith.constant 0 : index
    %c0_8 = arith.constant 0 : index
    %c0_9 = arith.constant 0 : index
    %c0_10 = arith.constant 0 : index
    %6 = vector.load %arg5[%c0_7, %c0_8, %c0_9, %c0_10] : memref<1x1x16x16xf32, #tpu.memory_space<vmem>>, vector<1x1x16x16xf32>
    %7 = vector.shape_cast %6 : vector<1x1x16x16xf32> to vector<16x16xf32>
    %cst_11 = arith.constant dense<0.000000e+00> : vector<16x16xf32>
    %8 = tpu.matmul %3, %5, %cst_11 {dimension_numbers = #tpu.dot_dimension_numbers<[1], [1], [0], [0], [0, 0, 1, 0], [], []>} : vector<16x16xf32>, vector<16x16xf32>, vector<16x16xf32> -> vector<16x16xf32>
    %c0_12 = arith.constant 0 : index
    %c0_13 = arith.constant 0 : index
    %c0_14 = arith.constant 0 : index
    %9 = vector.load %arg7[%c0_12, %c0_13, %c0_14] : memref<1x16x16xf32, #tpu.memory_space<vmem>>, vector<1x16x16xf32>
    %10 = vector.shape_cast %9 : vector<1x16x16xf32> to vector<16x16xf32>
    %11 = arith.addf %8, %10 : vector<16x16xf32>
    %c0_15 = arith.constant 0 : index
    %c0_16 = arith.constant 0 : index
    %c0_17 = arith.constant 0 : index
    %12 = vector.load %arg6[%c0_15, %c0_16, %c0_17] : memref<1x16x16xi8, #tpu.memory_space<vmem>>, vector<1x16x16xi8>
    %13 = vector.shape_cast %12 : vector<1x16x16xi8> to vector<16x16xi8>
    %c0_i8 = arith.constant 0 : i8
    %14 = vector.broadcast %c0_i8 : i8 to vector<16x16xi8>
    %15 = arith.cmpi ne, %13, %14 : vector<16x16xi8>
    %cst_18 = arith.constant -1.000000e+09 : f32
    %16 = vector.broadcast %cst_18 : f32 to vector<16x16xf32>
    %17 = arith.select %15, %16, %11 : vector<16x16xi1>, vector<16x16xf32>
    %c0_19 = arith.constant 0 : index
    %c0_20 = arith.constant 0 : index
    %c0_21 = arith.constant 0 : index
    %c0_22 = arith.constant 0 : index
    %18 = vector.load %arg10[%c0_19, %c0_20, %c0_21, %c0_22] : memref<1x1x16x16xf32, #tpu.memory_space<vmem>>, vector<1x1x16x16xf32>
    %19 = vector.shape_cast %18 : vector<1x1x16x16xf32> to vector<16x16xf32>
    %20 = vector.shape_cast %17 : vector<16x16xf32> to vector<1x1x16x16xf32>
    tpu.vector_store %arg10[%c0_19, %c0_20, %c0_21, %c0_22], %20 {strides = array<i32>} : memref<1x1x16x16xf32, #tpu.memory_space<vmem>>, vector<1x1x16x16xf32>,
    %cst_23 = arith.constant dense<0xFF800000> : vector<16xf32>
    %21 = vector.multi_reduction <maximumf>, %17, %cst_23 [1] : vector<16x16xf32> to vector<16xf32>
    %22 = vector.shape_cast %21 : vector<16xf32> to vector<16x1xf32>
    %23 = vector.broadcast %22 : vector<16x1xf32> to vector<16x16xf32>
    %24 = arith.subf %17, %23 : vector<16x16xf32>
    %25 = math.exp %24 : vector<16x16xf32>
    %cst_24 = arith.constant dense<0.000000e+00> : vector<16xf32>
    %26 = vector.multi_reduction <add>, %25, %cst_24 [1] : vector<16x16xf32> to vector<16xf32>
    %27 = vector.shape_cast %26 : vector<16xf32> to vector<16x1xf32>
    %28 = tpu.reciprocal %27 : vector<16x1xf32> -> vector<16x1xf32>
    %29 = vector.broadcast %28 : vector<16x1xf32> to vector<16x16xf32>
    %30 = arith.mulf %25, %29 : vector<16x16xf32>
    %c0_25 = arith.constant 0 : index
    %c0_26 = arith.constant 0 : index
    %c0_27 = arith.constant 0 : index
    %c0_28 = arith.constant 0 : index
    %31 = vector.load %arg9[%c0_25, %c0_26, %c0_27, %c0_28] : memref<1x1x16x16xf32, #tpu.memory_space<vmem>>, vector<1x1x16x16xf32>
    %32 = vector.shape_cast %31 : vector<1x1x16x16xf32> to vector<16x16xf32>
    %33 = vector.shape_cast %30 : vector<16x16xf32> to vector<1x1x16x16xf32>
    tpu.vector_store %arg9[%c0_25, %c0_26, %c0_27, %c0_28], %33 {strides = array<i32>} : memref<1x1x16x16xf32, #tpu.memory_space<vmem>>, vector<1x1x16x16xf32>,
    %cst_29 = arith.constant dense<0.000000e+00> : vector<16x16xf32>
    %34 = tpu.matmul %30, %7, %cst_29 {dimension_numbers = #tpu.dot_dimension_numbers<[1], [0], [0], [1], [0, 0, 1, 1], [], []>} : vector<16x16xf32>, vector<16x16xf32>, vector<16x16xf32> -> vector<16x16xf32>
    %c0_30 = arith.constant 0 : index
    %c0_31 = arith.constant 0 : index
    %c0_32 = arith.constant 0 : index
    %c0_33 = arith.constant 0 : index
    %35 = vector.load %arg8[%c0_30, %c0_31, %c0_32, %c0_33] : memref<1x1x16x16xf32, #tpu.memory_space<vmem>>, vector<1x1x16x16xf32>
    %36 = vector.shape_cast %35 : vector<1x1x16x16xf32> to vector<16x16xf32>
    %37 = vector.shape_cast %34 : vector<16x16xf32> to vector<1x1x16x16xf32>
    tpu.vector_store %arg8[%c0_30, %c0_31, %c0_32, %c0_33], %37 {strides = array<i32>} : memref<1x1x16x16xf32, #tpu.memory_space<vmem>>, vector<1x1x16x16xf32>,
    return
  }
  func.func @transform_0(%arg0: i32, %arg1: i32, %arg2: i32) -> (i32, i32, i32, i32) {
    %c0_i32 = arith.constant 0 : i32
    %c0_i32_0 = arith.constant 0 : i32
    return %arg0, %arg2, %arg1, %c0_i32 : i32, i32, i32, i32
  }
  func.func @transform_1(%arg0: i32, %arg1: i32, %arg2: i32) -> (i32, i32, i32, i32) {
    %c0_i32 = arith.constant 0 : i32
    %c0_i32_0 = arith.constant 0 : i32
    %c0_i32_1 = arith.constant 0 : i32
    return %arg0, %arg2, %c0_i32, %c0_i32_0 : i32, i32, i32, i32
  }
  func.func @transform_2(%arg0: i32, %arg1: i32, %arg2: i32) -> (i32, i32, i32, i32) {
    %c0_i32 = arith.constant 0 : i32
    %c0_i32_0 = arith.constant 0 : i32
    %c0_i32_1 = arith.constant 0 : i32
    return %arg0, %arg2, %c0_i32, %c0_i32_0 : i32, i32, i32, i32
  }
  func.func @transform_3(%arg0: i32, %arg1: i32, %arg2: i32) -> (i32, i32, i32) {
    %c0_i32 = arith.constant 0 : i32
    %c0_i32_0 = arith.constant 0 : i32
    return %arg0, %arg1, %c0_i32 : i32, i32, i32
  }
  func.func @transform_4(%arg0: i32, %arg1: i32, %arg2: i32) -> (i32, i32, i32) {
    %c0_i32 = arith.constant 0 : i32
    %c0_i32_0 = arith.constant 0 : i32
    return %arg0, %arg1, %c0_i32 : i32, i32, i32
  }
  func.func @transform_5(%arg0: i32, %arg1: i32, %arg2: i32) -> (i32, i32, i32, i32) {
    %c0_i32 = arith.constant 0 : i32
    %c0_i32_0 = arith.constant 0 : i32
    return %arg0, %arg2, %arg1, %c0_i32 : i32, i32, i32, i32
  }
  func.func @transform_6(%arg0: i32, %arg1: i32, %arg2: i32) -> (i32, i32, i32, i32) {
    %c0_i32 = arith.constant 0 : i32
    %c0_i32_0 = arith.constant 0 : i32
    return %arg0, %arg2, %arg1, %c0_i32 : i32, i32, i32, i32
  }
  func.func @transform_7(%arg0: i32, %arg1: i32, %arg2: i32) -> (i32, i32, i32, i32) {
    %c0_i32 = arith.constant 0 : i32
    %c0_i32_0 = arith.constant 0 : i32
    return %arg0, %arg2, %arg1, %c0_i32 : i32, i32, i32, i32
  }
}

</mosaic_0001>

<llo_original>
// kernel: tpu_custom_call.1
$region0: #{tpu_custom_call.1}
  #allocation0 [shape = 'u32[]', space=smem, size = 0x4, offset = 0x4, fixed_abs, tag = 'smem constant byte address 0x4 - core index']
  #allocation1 [shape = 'u32[72,128]{1,0:T(1,128)}', space=vmem, size = 0x9000, scoped, tag = 'internal scratch']
  %s0 = inlined_call_operand.hbm [shape: f32[2,4,16,16], index: 0, kind: input, shape index: {}]
  %s1 = inlined_call_operand.hbm [shape: f32[2,4,16,16], index: 1, kind: input, shape index: {}]
  %s2 = inlined_call_operand.hbm [shape: f32[2,4,16,16], index: 2, kind: input, shape index: {}]
  %s3 = inlined_call_operand.hbm [shape: s8[2,16,16], index: 3, kind: input, shape index: {}]
  %s4 = inlined_call_operand.hbm [shape: f32[2,16,16], index: 4, kind: input, shape index: {}]
  %s5 = inlined_call_operand.hbm [shape: f32[2,4,16,16], index: 5, kind: output, shape index: {0}]
  %s6 = inlined_call_operand.hbm [shape: f32[2,4,16,16], index: 6, kind: output, shape index: {1}]
  %s7 = inlined_call_operand.hbm [shape: f32[2,4,16,16], index: 7, kind: output, shape index: {2}]
  %8 = xla_tuple %s5, %s6, %s7
  %s9 = sld [smem:[#allocation0]]
  $region89: #{tpu_custom_call.1} parent=0
    _
  %s11 = ssub.s32 1, %s9
  %s12 = scalar_select 0, %s11, %s9
  $region1: #{tpu_custom_call.1} parent=0
    #allocation2 [shape = 'u8[16384]{0}', space=vmem, size = 0x4000, scoped, tag = 'input window, operand 0']
    #allocation3 [shape = 's32[2]{0}', space=sflag, size = 0x8, scoped, tag = 'scoped memory for tpu_custom_call.1']
    #allocation4 [shape = 's32[2]{0}', space=sflag, size = 0x8, scoped, tag = 'scoped memory for tpu_custom_call.1']
    #allocation5 [shape = 'u8[16384]{0}', space=vmem, size = 0x4000, scoped, tag = 'input window, operand 1']
    #allocation6 [shape = 's32[2]{0}', space=sflag, size = 0x8, scoped, tag = 'scoped memory for tpu_custom_call.1']
    #allocation7 [shape = 'u8[16384]{0}', space=vmem, size = 0x4000, scoped, tag = 'input window, operand 2']
    #allocation8 [shape = 'u8[4096]{0}', space=vmem, size = 0x1000, scoped, tag = 'input window, operand 3']
    #allocation9 [shape = 's32[2]{0}', space=sflag, size = 0x8, scoped, tag = 'scoped memory for tpu_custom_call.1']
    #allocation10 [shape = 'u8[16384]{0}', space=vmem, size = 0x4000, scoped, tag = 'input window, operand 4']
    #allocation11 [shape = 'u8[16384]{0}', space=vmem, size = 0x4000, scoped, tag = 'output window, operand 0']
    #allocation12 [shape = 'u8[16384]{0}', space=vmem, size = 0x4000, scoped, tag = 'output window, operand 1']
    #allocation13 [shape = 's32[2]{0}', space=sflag, size = 0x8, scoped, tag = 'scoped memory for tpu_custom_call.1']
    #allocation14 [shape = 'u8[16384]{0}', space=vmem, size = 0x4000, scoped, tag = 'output window, operand 2']
    %13 = vsyncpa [#allocation3], 0
    %s14 = scalar_lea.sflag [#allocation3], 1
    %15 = vsyncpa %s14, 0
    %16 = vsyncpa [#allocation6], 0
    %s17 = scalar_lea.sflag [#allocation6], 1
    %18 = vsyncpa %s17, 0
    %19 = vsyncpa [#allocation9], 0
    %s20 = scalar_lea.sflag [#allocation9], 1
    %21 = vsyncpa %s20, 0
    %22 = vsyncpa [#allocation4], 0
    %s23 = scalar_lea.sflag [#allocation4], 1
    %24 = vsyncpa %s23, 0
    %25 = vsyncpa [#allocation13], 0
    %s26 = scalar_lea.sflag [#allocation13], 1
    %27 = vsyncpa %s26, 0
    loop: start=0, step=1, limit=10
    $region2: #{tpu_custom_call.1} parent=1 // loop_pre_header
      _
    $region3: #{tpu_custom_call.1} parent=1 // loop_header
      %s29 = sphi 0, %s33
      %p30 = scmp.ge.s32.totalorder %s29, 10
      %s36 = sphi 0, %s55
      %s37 = sphi 0, %s51
      %s38 = sphi 0, %s47
      %s39 = sphi 0, %s36
      %s40 = sphi 0, %s37
      %s41 = sphi 0, %s38
      %s42 = sphi 0, %s39
      %s43 = sphi 0, %s40
      %s44 = sphi 0, %s41
      %s62 = sphi 0, %s64
      %s65 = sphi 0, %s62
      %s66 = sphi 0, %s65
      %s82 = sphi 0, %s66
      %s90 = sphi 0, %s92
      %s93 = sphi 0, %s90
      %s94 = sphi 0, %s93
      %s110 = sphi 0, %s94
      %s118 = sphi 0, %s120
      %s121 = sphi 0, %s118
      %s122 = sphi 0, %s121
      %s138 = sphi 0, %s122
      %s146 = sphi 0, %s148
      %s149 = sphi 0, %s146
      %s150 = sphi 0, %s149
      %s166 = sphi 0, %s150
      %s174 = sphi 0, %s176
      %s177 = sphi 0, %s174
      %s178 = sphi 0, %s177
      %s194 = sphi 0, %s178
      %s204 = sphi 0, %s206
      %s207 = sphi 0, %s204
      %s208 = sphi 0, %s207
      %s224 = sphi 0, %s208
      %s234 = sphi 0, %s236
      %s237 = sphi 0, %s234
      %s238 = sphi 0, %s237
      %s254 = sphi 0, %s238
      %s264 = sphi 0, %s266
      %s267 = sphi 0, %s264
      %s268 = sphi 0, %s267
      %s284 = sphi 0, %s268
    $region4: #{tpu_custom_call.1} parent=1 // loop_header_branch
      %32 = sbr.rel (%p30) target = $region8
    $region5: #{tpu_custom_call.1} parent=1 // loop_body
      %s34 = ssub.s32 %s29, 1
      %s35 = ssub.s32 %s29, 2
      %s45 = sadd.s32 1, %s38
      %p46 = scmp.ge.s32.totalorder %s45, 4
      %s47 = scalar_select %p46, 0, %s45
      %s48 = sadd.s32 1, %s37
      %s49 = scalar_select %p46, %s48, %s37
      %p50 = scmp.ge.s32.totalorder %s49, 1
      %s51 = scalar_select %p50, 0, %s49
      %s52 = sadd.s32 1, %s36
      %s53 = scalar_select %p50, %s52, %s36
      %p54 = scmp.ge.s32.totalorder %s53, 2
      %s55 = scalar_select %p54, 0, %s53
      %s56 = ssub.s32 %s36, %s55
      %s57 = ssub.s32 %s38, %s47
      %s58 = sor.u32 %s56, %s57
      %s59 = ssub.s32 %s37, %s51
      %s60 = sor.u32 %s58, %s59
      %p61 = scmp.eq.s32.totalorder %s60, 0
      %s63 = sadd.s32 %s62, 1
      %s64 = scalar_select %p61, %s62, %s63
      %p67 = pneg %p61
      %p68 = scmp.eq.s32.totalorder %s29, 7
      %p69 = por %p67, %p68
      %p70 = scmp.ne.s32.totalorder %s62, %s65
      %p71 = scmp.eq.s32.totalorder %s29, 0
      %p72 = por %p70, %p71
      %p73 = scmp.ne.s32.totalorder %s62, %s65
      %p74 = scmp.eq.s32.totalorder %s34, 7
      %p75 = por %p73, %p74
      %p76 = scmp.ne.s32.totalorder %s65, %s66
      %p77 = scmp.eq.s32.totalorder %s34, 0
      %p78 = por %p76, %p77
      %p79 = scmp.ne.s32.totalorder %s65, %s66
      %p80 = scmp.eq.s32.totalorder %s35, 7
      %p81 = por %p79, %p80
      %p83 = scmp.ne.s32.totalorder %s66, %s82
      %p84 = scmp.eq.s32.totalorder %s35, 0
      %p85 = por %p83, %p84
      %s86 = ssub.s32 %s36, %s55
      %s87 = ssub.s32 %s38, %s47
      %s88 = sor.u32 %s86, %s87
      %p89 = scmp.eq.s32.totalorder %s88, 0
      %s91 = sadd.s32 %s90, 1
      %s92 = scalar_select %p89, %s90, %s91
      %p95 = pneg %p89
      %p96 = scmp.eq.s32.totalorder %s29, 7
      %p97 = por %p95, %p96
      %p98 = scmp.ne.s32.totalorder %s90, %s93
      %p99 = scmp.eq.s32.totalorder %s29, 0
      %p100 = por %p98, %p99
      %p101 = scmp.ne.s32.totalorder %s90, %s93
      %p102 = scmp.eq.s32.totalorder %s34, 7
      %p103 = por %p101, %p102
      %p104 = scmp.ne.s32.totalorder %s93, %s94
      %p105 = scmp.eq.s32.totalorder %s34, 0
      %p106 = por %p104, %p105
      %p107 = scmp.ne.s32.totalorder %s93, %s94
      %p108 = scmp.eq.s32.totalorder %s35, 7
      %p109 = por %p107, %p108
      %p111 = scmp.ne.s32.totalorder %s94, %s110
      %p112 = scmp.eq.s32.totalorder %s35, 0
      %p113 = por %p111, %p112
      %s114 = ssub.s32 %s36, %s55
      %s115 = ssub.s32 %s38, %s47
      %s116 = sor.u32 %s114, %s115
      %p117 = scmp.eq.s32.totalorder %s116, 0
      %s119 = sadd.s32 %s118, 1
      %s120 = scalar_select %p117, %s118, %s119
      %p123 = pneg %p117
      %p124 = scmp.eq.s32.totalorder %s29, 7
      %p125 = por %p123, %p124
      %p126 = scmp.ne.s32.totalorder %s118, %s121
      %p127 = scmp.eq.s32.totalorder %s29, 0
      %p128 = por %p126, %p127
      %p129 = scmp.ne.s32.totalorder %s118, %s121
      %p130 = scmp.eq.s32.totalorder %s34, 7
      %p131 = por %p129, %p130
      %p132 = scmp.ne.s32.totalorder %s121, %s122
      %p133 = scmp.eq.s32.totalorder %s34, 0
      %p134 = por %p132, %p133
      %p135 = scmp.ne.s32.totalorder %s121, %s122
      %p136 = scmp.eq.s32.totalorder %s35, 7
      %p137 = por %p135, %p136
      %p139 = scmp.ne.s32.totalorder %s122, %s138
      %p140 = scmp.eq.s32.totalorder %s35, 0
      %p141 = por %p139, %p140
      %s142 = ssub.s32 %s36, %s55
      %s143 = ssub.s32 %s37, %s51
      %s144 = sor.u32 %s142, %s143
      %p145 = scmp.eq.s32.totalorder %s144, 0
      %s147 = sadd.s32 %s146, 1
      %s148 = scalar_select %p145, %s146, %s147
      %p151 = pneg %p145
      %p152 = scmp.eq.s32.totalorder %s29, 7
      %p153 = por %p151, %p152
      %p154 = scmp.ne.s32.totalorder %s146, %s149
      %p155 = scmp.eq.s32.totalorder %s29, 0
      %p156 = por %p154, %p155
      %p157 = scmp.ne.s32.totalorder %s146, %s149
      %p158 = scmp.eq.s32.totalorder %s34, 7
      %p159 = por %p157, %p158
      %p160 = scmp.ne.s32.totalorder %s149, %s150
      %p161 = scmp.eq.s32.totalorder %s34, 0
      %p162 = por %p160, %p161
      %p163 = scmp.ne.s32.totalorder %s149, %s150
      %p164 = scmp.eq.s32.totalorder %s35, 7
      %p165 = por %p163, %p164
      %p167 = scmp.ne.s32.totalorder %s150, %s166
      %p168 = scmp.eq.s32.totalorder %s35, 0
      %p169 = por %p167, %p168
      %s170 = ssub.s32 %s36, %s55
      %s171 = ssub.s32 %s37, %s51
      %s172 = sor.u32 %s170, %s171
      %p173 = scmp.eq.s32.totalorder %s172, 0
      %s175 = sadd.s32 %s174, 1
      %s176 = scalar_select %p173, %s174, %s175
      %p179 = pneg %p173
      %p180 = scmp.eq.s32.totalorder %s29, 7
      %p181 = por %p179, %p180
      %p182 = scmp.ne.s32.totalorder %s174, %s177
      %p183 = scmp.eq.s32.totalorder %s29, 0
      %p184 = por %p182, %p183
      %p185 = scmp.ne.s32.totalorder %s174, %s177
      %p186 = scmp.eq.s32.totalorder %s34, 7
      %p187 = por %p185, %p186
      %p188 = scmp.ne.s32.totalorder %s177, %s178
      %p189 = scmp.eq.s32.totalorder %s34, 0
      %p190 = por %p188, %p189
      %p191 = scmp.ne.s32.totalorder %s177, %s178
      %p192 = scmp.eq.s32.totalorder %s35, 7
      %p193 = por %p191, %p192
      %p195 = scmp.ne.s32.totalorder %s178, %s194
      %p196 = scmp.eq.s32.totalorder %s35, 0
      %p197 = por %p195, %p196
      %s198 = ssub.s32 %s36, %s55
      %s199 = ssub.s32 %s38, %s47
      %s200 = sor.u32 %s198, %s199
      %s201 = ssub.s32 %s37, %s51
      %s202 = sor.u32 %s200, %s201
      %p203 = scmp.eq.s32.totalorder %s202, 0
      %s205 = sadd.s32 %s204, 1
      %s206 = scalar_select %p203, %s204, %s205
      %p209 = pneg %p203
      %p210 = scmp.eq.s32.totalorder %s29, 7
      %p211 = por %p209, %p210
      %p212 = scmp.ne.s32.totalorder %s204, %s207
      %p213 = scmp.eq.s32.totalorder %s29, 0
      %p214 = por %p212, %p213
      %p215 = scmp.ne.s32.totalorder %s204, %s207
      %p216 = scmp.eq.s32.totalorder %s34, 7
      %p217 = por %p215, %p216
      %p218 = scmp.ne.s32.totalorder %s207, %s208
      %p219 = scmp.eq.s32.totalorder %s34, 0
      %p220 = por %p218, %p219
      %p221 = scmp.ne.s32.totalorder %s207, %s208
      %p222 = scmp.eq.s32.totalorder %s35, 7
      %p223 = por %p221, %p222
      %p225 = scmp.ne.s32.totalorder %s208, %s224
      %p226 = scmp.eq.s32.totalorder %s35, 0
      %p227 = por %p225, %p226
      %s228 = ssub.s32 %s36, %s55
      %s229 = ssub.s32 %s38, %s47
      %s230 = sor.u32 %s228, %s229
      %s231 = ssub.s32 %s37, %s51
      %s232 = sor.u32 %s230, %s231
      %p233 = scmp.eq.s32.totalorder %s232, 0
      %s235 = sadd.s32 %s234, 1
      %s236 = scalar_select %p233, %s234, %s235
      %p239 = pneg %p233
      %p240 = scmp.eq.s32.totalorder %s29, 7
      %p241 = por %p239, %p240
      %p242 = scmp.ne.s32.totalorder %s234, %s237
      %p243 = scmp.eq.s32.totalorder %s29, 0
      %p244 = por %p242, %p243
      %p245 = scmp.ne.s32.totalorder %s234, %s237
      %p246 = scmp.eq.s32.totalorder %s34, 7
      %p247 = por %p245, %p246
      %p248 = scmp.ne.s32.totalorder %s237, %s238
      %p249 = scmp.eq.s32.totalorder %s34, 0
      %p250 = por %p248, %p249
      %p251 = scmp.ne.s32.totalorder %s237, %s238
      %p252 = scmp.eq.s32.totalorder %s35, 7
      %p253 = por %p251, %p252
      %p255 = scmp.ne.s32.totalorder %s238, %s254
      %p256 = scmp.eq.s32.totalorder %s35, 0
      %p257 = por %p255, %p256
      %s258 = ssub.s32 %s36, %s55
      %s259 = ssub.s32 %s38, %s47
      %s260 = sor.u32 %s258, %s259
      %s261 = ssub.s32 %s37, %s51
      %s262 = sor.u32 %s260, %s261
      %p263 = scmp.eq.s32.totalorder %s262, 0
      %s265 = sadd.s32 %s264, 1
      %s266 = scalar_select %p263, %s264, %s265
      %p269 = pneg %p263
      %p270 = scmp.eq.s32.totalorder %s29, 7
      %p271 = por %p269, %p270
      %p272 = scmp.ne.s32.totalorder %s264, %s267
      %p273 = scmp.eq.s32.totalorder %s29, 0
      %p274 = por %p272, %p273
      %p275 = scmp.ne.s32.totalorder %s264, %s267
      %p276 = scmp.eq.s32.totalorder %s34, 7
      %p277 = por %p275, %p276
      %p278 = scmp.ne.s32.totalorder %s267, %s268
      %p279 = scmp.eq.s32.totalorder %s34, 0
      %p280 = por %p278, %p279
      %p281 = scmp.ne.s32.totalorder %s267, %s268
      %p282 = scmp.eq.s32.totalorder %s35, 7
      %p283 = por %p281, %p282
      %p285 = scmp.ne.s32.totalorder %s268, %s284
      %p286 = scmp.eq.s32.totalorder %s35, 0
      %p287 = por %p285, %p286
      %p288 = scmp.le.s32.totalorder 1, %s29
      %p289 = scmp.lt.s32.totalorder %s29, 9
      %p290 = pnand %p288, %p289
      %p291 = pneg %p290
      // Predicated region
      $region9: #{tpu_custom_call.1} parent=5 // pred_check
        _
      $region10: #{tpu_custom_call.1} parent=5 // pred_check_branch
        %293 = sbr.rel (%p290) target = $region12
      $region11: #{tpu_custom_call.1} parent=5 // pred_region
        %s294 = ssub.s32 %s29, 1
      $region12: #{tpu_custom_call.1} parent=5 // pred_fallthru
        _
      %p295 = scmp.lt.s32.totalorder %s29, 8
      // Predicated region
      $region13: #{tpu_custom_call.1} parent=5 // pred_check
        %p296 = pneg %p295
      $region14: #{tpu_custom_call.1} parent=5 // pred_check_branch
        %298 = sbr.rel (%p296) target = $region16
      $region15: #{tpu_custom_call.1} parent=5 // pred_region
        // Predicated region
        $region17: #{tpu_custom_call.1} parent=15 // pred_check
          %p299 = pneg %p72
        $region18: #{tpu_custom_call.1} parent=15 // pred_check_branch
          %301 = sbr.rel (%p299) target = $region20
        $region19: #{tpu_custom_call.1} parent=15 // pred_region
          %s302 = sand.u32 %s62, 1
          %s303 = scalar_lea.sflag [#allocation3], %s302
          %s304 = sand.u32 %s62, 1
          %s305 = smul.addr %s304, 16
          %s306 = scalar_lea.vmem [#allocation2], %s305
          %s307 = smul.u32 2, %s37
          %309 = vsyncadd %s303, 0
          %s310 = smul.addr %s38, 2
          %s311 = sadd.s32 %s307, %s310
          %s312 = smul.addr %s36, 8
          %s313 = sadd.s32 %s311, %s312
          %s314 = smul.addr %s313, 8
          %s315 = scalar_lea.hbm %s0, %s314
          %s316 = sshll.u32 %s315, 4
          %s317 = int_to_ptr.hbm [resolvable:$true] %s316
          %s318 = sshll.u32 %s306, 4
          %s319 = int_to_ptr.vmem [resolvable:$true] %s318
          %324 = dma.hbm_to_vmem [thread:$0]  %s317, 256, %s319, %s303, 128, 128, 8
        $region20: #{tpu_custom_call.1} parent=15 // pred_fallthru
          _
        // Predicated region
        $region21: #{tpu_custom_call.1} parent=15 // pred_check
          %p325 = pneg %p100
        $region22: #{tpu_custom_call.1} parent=15 // pred_check_branch
          %327 = sbr.rel (%p325) target = $region24
        $region23: #{tpu_custom_call.1} parent=15 // pred_region
          %s328 = sand.u32 %s29, 1
          %s329 = scalar_lea.sflag [#allocation6], %s328
          %s330 = sand.u32 %s90, 1
          %s331 = smul.addr %s330, 16
          %s332 = scalar_lea.vmem [#allocation5], %s331
          %334 = vsyncadd %s329, 0
          %s335 = smul.addr %s38, 2
          %s336 = smul.addr %s36, 8
          %s337 = sadd.s32 %s335, %s336
          %s338 = smul.addr %s337, 8
          %s339 = scalar_lea.hbm %s1, %s338
          %s340 = sshll.u32 %s339, 4
          %s341 = int_to_ptr.hbm [resolvable:$true] %s340
          %s342 = sshll.u32 %s332, 4
          %s343 = int_to_ptr.vmem [resolvable:$true] %s342
          %348 = dma.hbm_to_vmem [thread:$0]  %s341, 256, %s343, %s329, 128, 128, 8
        $region24: #{tpu_custom_call.1} parent=15 // pred_fallthru
          _
        // Predicated region
        $region25: #{tpu_custom_call.1} parent=15 // pred_check
          %p349 = pneg %p128
        $region26: #{tpu_custom_call.1} parent=15 // pred_check_branch
          %351 = sbr.rel (%p349) target = $region28
        $region27: #{tpu_custom_call.1} parent=15 // pred_region
          %s352 = sand.u32 %s29, 1
          %s353 = scalar_lea.sflag [#allocation6], %s352
          %s354 = sand.u32 %s118, 1
          %s355 = smul.addr %s354, 16
          %s356 = scalar_lea.vmem [#allocation7], %s355
          %358 = vsyncadd %s353, 0
          %s359 = smul.addr %s38, 2
          %s360 = smul.addr %s36, 8
          %s361 = sadd.s32 %s359, %s360
          %s362 = smul.addr %s361, 8
          %s363 = scalar_lea.hbm %s2, %s362
          %s364 = sshll.u32 %s363, 4
          %s365 = int_to_ptr.hbm [resolvable:$true] %s364
          %s366 = sshll.u32 %s356, 4
          %s367 = int_to_ptr.vmem [resolvable:$true] %s366
          %372 = dma.hbm_to_vmem [thread:$0]  %s365, 256, %s367, %s353, 128, 128, 8
        $region28: #{tpu_custom_call.1} parent=15 // pred_fallthru
          _
        // Predicated region
        $region29: #{tpu_custom_call.1} parent=15 // pred_check
          %p373 = pneg %p156
        $region30: #{tpu_custom_call.1} parent=15 // pred_check_branch
          %375 = sbr.rel (%p373) target = $region32
        $region31: #{tpu_custom_call.1} parent=15 // pred_region
          %s376 = sand.u32 %s29, 1
          %s377 = scalar_lea.sflag [#allocation9], %s376
          %s378 = sand.u32 %s146, 1
          %s379 = smul.addr %s378, 4
          %s380 = scalar_lea.vmem [#allocation8], %s379
          %s381 = smul.u32 2, %s37
          %383 = vsyncadd %s377, 0
          %s384 = smul.addr %s36, 2
          %s385 = sadd.s32 %s381, %s384
          %s386 = smul.addr %s385, 2
          %s387 = scalar_lea.hbm %s3, %s386
          %s388 = sshll.u32 %s387, 4
          %s389 = int_to_ptr.hbm [resolvable:$true] %s388
          %s390 = sshll.u32 %s380, 4
          %s391 = int_to_ptr.vmem [resolvable:$true] %s390
          %396 = dma.hbm_to_vmem [thread:$0]  %s389, 64, %s391, %s377, 32, 32, 2
        $region32: #{tpu_custom_call.1} parent=15 // pred_fallthru
          _
        // Predicated region
        $region33: #{tpu_custom_call.1} parent=15 // pred_check
          %p397 = pneg %p184
        $region34: #{tpu_custom_call.1} parent=15 // pred_check_branch
          %399 = sbr.rel (%p397) target = $region36
        $region35: #{tpu_custom_call.1} parent=15 // pred_region
          %s400 = sand.u32 %s29, 1
          %s401 = scalar_lea.sflag [#allocation9], %s400
          %s402 = sand.u32 %s174, 1
          %s403 = smul.addr %s402, 16
          %s404 = scalar_lea.vmem [#allocation10], %s403
          %s405 = smul.u32 2, %s37
          %407 = vsyncadd %s401, 0
          %s408 = smul.addr %s36, 2
          %s409 = sadd.s32 %s405, %s408
          %s410 = smul.addr %s409, 8
          %s411 = scalar_lea.hbm %s4, %s410
          %s412 = sshll.u32 %s411, 4
          %s413 = int_to_ptr.hbm [resolvable:$true] %s412
          %s414 = sshll.u32 %s404, 4
          %s415 = int_to_ptr.vmem [resolvable:$true] %s414
          %420 = dma.hbm_to_vmem [thread:$0]  %s413, 256, %s415, %s401, 128, 128, 8
        $region36: #{tpu_custom_call.1} parent=15 // pred_fallthru
          _
      $region16: #{tpu_custom_call.1} parent=5 // pred_fallthru
        _
      %p421 = scmp.le.s32.totalorder 1, %s29
      %p422 = scmp.lt.s32.totalorder %s29, 9
      %p423 = pnand %p421, %p422
      %p424 = pneg %p423
      // Predicated region
      $region37: #{tpu_custom_call.1} parent=5 // pred_check
        _
      $region38: #{tpu_custom_call.1} parent=5 // pred_check_branch
        %426 = sbr.rel (%p423) target = $region40
      $region39: #{tpu_custom_call.1} parent=5 // pred_region
        %s427 = ssub.s32 %s29, 1
        %s428 = sand.u32 %s65, 1
        %s429 = scalar_lea.sflag [#allocation3], %s428
        %s430 = sand.u32 %s65, 1
        %s431 = smul.addr %s430, 16
        %s432 = scalar_lea.vmem [#allocation2], %s431
        // Predicated region
        $region41: #{tpu_custom_call.1} parent=39 // pred_check
          %p433 = pneg %p78
        $region42: #{tpu_custom_call.1} parent=39 // pred_check_branch
          %435 = sbr.rel (%p433) target = $region44
        $region43: #{tpu_custom_call.1} parent=39 // pred_region
          %437 = dma.done %s429, 256
        $region44: #{tpu_custom_call.1} parent=39 // pred_fallthru
          _
        %s438 = sand.u32 %s34, 1
        %s439 = scalar_lea.sflag [#allocation6], %s438
        %s440 = sand.u32 %s93, 1
        %s441 = smul.addr %s440, 16
        %s442 = scalar_lea.vmem [#allocation5], %s441
        // Predicated region
        $region45: #{tpu_custom_call.1} parent=39 // pred_check
          %p443 = pneg %p106
        $region46: #{tpu_custom_call.1} parent=39 // pred_check_branch
          %445 = sbr.rel (%p443) target = $region48
        $region47: #{tpu_custom_call.1} parent=39 // pred_region
          %447 = dma.done %s439, 256
        $region48: #{tpu_custom_call.1} parent=39 // pred_fallthru
          _
        %s448 = sand.u32 %s34, 1
        %s449 = scalar_lea.sflag [#allocation6], %s448
        %s450 = sand.u32 %s121, 1
        %s451 = smul.addr %s450, 16
        %s452 = scalar_lea.vmem [#allocation7], %s451
        // Predicated region
        $region49: #{tpu_custom_call.1} parent=39 // pred_check
          %p453 = pneg %p134
        $region50: #{tpu_custom_call.1} parent=39 // pred_check_branch
          %455 = sbr.rel (%p453) target = $region52
        $region51: #{tpu_custom_call.1} parent=39 // pred_region
          %457 = dma.done %s449, 256
        $region52: #{tpu_custom_call.1} parent=39 // pred_fallthru
          _
        %s458 = sand.u32 %s34, 1
        %s459 = scalar_lea.sflag [#allocation9], %s458
        %s460 = sand.u32 %s149, 1
        %s461 = smul.addr %s460, 4
        %s462 = scalar_lea.vmem [#allocation8], %s461
        // Predicated region
        $region53: #{tpu_custom_call.1} parent=39 // pred_check
          %p463 = pneg %p162
        $region54: #{tpu_custom_call.1} parent=39 // pred_check_branch
          %465 = sbr.rel (%p463) target = $region56
        $region55: #{tpu_custom_call.1} parent=39 // pred_region
          %467 = dma.done %s459, 64
        $region56: #{tpu_custom_call.1} parent=39 // pred_fallthru
          _
        %s468 = sand.u32 %s34, 1
        %s469 = scalar_lea.sflag [#allocation9], %s468
        %s470 = sand.u32 %s177, 1
        %s471 = smul.addr %s470, 16
        %s472 = scalar_lea.vmem [#allocation10], %s471
        // Predicated region
        $region57: #{tpu_custom_call.1} parent=39 // pred_check
          %p473 = pneg %p190
        $region58: #{tpu_custom_call.1} parent=39 // pred_check_branch
          %475 = sbr.rel (%p473) target = $region60
        $region59: #{tpu_custom_call.1} parent=39 // pred_region
          %477 = dma.done %s469, 256
        $region60: #{tpu_custom_call.1} parent=39 // pred_fallthru
          _
        %s478 = sand.u32 %s65, 1
        %s479 = scalar_lea.sflag [#allocation3], %s478
        %s480 = sand.u32 %s65, 1
        %s481 = smul.addr %s480, 16
        %s482 = scalar_lea.vmem [#allocation2], %s481
        %p483 = pneg %p78
        %p484 = pneg %p75
        %s485 = sand.u32 %s34, 1
        %s486 = scalar_lea.sflag [#allocation6], %s485
        %s487 = sand.u32 %s93, 1
        %s488 = smul.addr %s487, 16
        %s489 = scalar_lea.vmem [#allocation5], %s488
        %p490 = pneg %p106
        %p491 = pneg %p103
        %s492 = sand.u32 %s34, 1
        %s493 = scalar_lea.sflag [#allocation6], %s492
        %s494 = sand.u32 %s121, 1
        %s495 = smul.addr %s494, 16
        %s496 = scalar_lea.vmem [#allocation7], %s495
        %p497 = pneg %p134
        %p498 = pneg %p131
        %s499 = sand.u32 %s34, 1
        %s500 = scalar_lea.sflag [#allocation9], %s499
        %s501 = sand.u32 %s149, 1
        %s502 = smul.addr %s501, 4
        %s503 = scalar_lea.vmem [#allocation8], %s502
        %p504 = pneg %p162
        %p505 = pneg %p159
        %s506 = sand.u32 %s34, 1
        %s507 = scalar_lea.sflag [#allocation9], %s506
        %s508 = sand.u32 %s177, 1
        %s509 = smul.addr %s508, 16
        %s510 = scalar_lea.vmem [#allocation10], %s509
        %p511 = pneg %p190
        %p512 = pneg %p187
        %p513 = pneg %p220
        %p514 = pneg %p217
        %s515 = sand.u32 %s207, 1
        %s516 = scalar_lea.sflag [#allocation4], %s515
        %s517 = sand.u32 %s207, 1
        %s518 = smul.addr %s517, 16
        %s519 = scalar_lea.vmem [#allocation11], %s518
        %p520 = pneg %p250
        %p521 = pneg %p247
        %s522 = sand.u32 %s34, 1
        %s523 = scalar_lea.sflag [#allocation13], %s522
        %s524 = sand.u32 %s237, 1
        %s525 = smul.addr %s524, 16
        %s526 = scalar_lea.vmem [#allocation12], %s525
        %p527 = pneg %p280
        %p528 = pneg %p277
        %s529 = sand.u32 %s34, 1
        %s530 = scalar_lea.sflag [#allocation13], %s529
        %s531 = sand.u32 %s267, 1
        %s532 = smul.addr %s531, 16
        %s533 = scalar_lea.vmem [#allocation14], %s532
        %s534 = smul.u32 2, %s40
        %s535 = smul.u32 2, %s40
        %s536 = smul.u32 2, %s40
        %s537 = smul.u32 2, %s40
        %s538 = smul.u32 2, %s40
        %s539 = smul.u32 2, %s40
        %v542 = vld [vmem:[%s432] sm:$0xff]
        %v543 = vld [vmem:[%s432 + $0x8] sm:$0xff]
        %v544 = vmul.f32 %v542, 0.125
        %v545 = vmul.f32 %v543, 0.125
        %v546 = vld [vmem:[%s442] sm:$0xff]
        %v547 = vld [vmem:[%s442 + $0x8] sm:$0xff]
        %v548 = vld [vmem:[%s452] sm:$0xff]
        %v549 = vld [vmem:[%s452 + $0x8] sm:$0xff]
        %v550 = vld [vmem:[%s472] sm:$0xff]
        %v551 = vld [vmem:[%s472 + $0x8] sm:$0xff]
        %vm552 = vcmask 130048
        %v554 = vsel %vm552, %v544, 0
        %v557 = vsel %vm552, %v545, 0
        %v560 = vsel %vm552, %v546, 0
        %v563 = vsel %vm552, %v547, 0
        %565 = vmatpush.xpose.msra.mxu0 0.0
        %566 = vmatpush.xpose.msra.mxu0 0.0
        %567 = vmatpush.xpose.msra.mxu0 0.0
        %568 = vmatpush.xpose.msra.mxu0 0.0
        %569 = vmatpush.xpose.msra.mxu0 0.0
        %570 = vmatpush.xpose.msra.mxu0 0.0
        %571 = vmatpush.xpose.msra.mxu0 0.0
        %572 = vmatpush.xpose.msra.mxu0 0.0
        %573 = vmatpush.xpose.msra.mxu0 0.0
        %574 = vmatpush.xpose.msra.mxu0 0.0
        %575 = vmatpush.xpose.msra.mxu0 0.0
        %576 = vmatpush.xpose.msra.mxu0 0.0
        %577 = vmatpush.xpose.msra.mxu0 0.0
        %578 = vmatpush.xpose.msra.mxu0 0.0
        %579 = vmatpush.xpose.msra.mxu0 %v563
        %580 = vmatpush.xpose.msra.mxu0 %v560
        %581 = vmatmul.f32.gmra.mxu0 %v554
        %v582 = vpop.f32.mrf.mxu0
        %v583 = vadd.f32 %v550, %v582
        %584 = vmatmul.f32.gmra.mxu0 %v557
        %v585 = vpop.f32.mrf.mxu0
        %v586 = vadd.f32 %v551, %v585
        %587 = vdwg.mxu0
        %v588 = vld [vmem:[%s462] sm:$0x3]
        %v589 = vld [vmem:[%s462 + $0x2] sm:$0x3]
        %vm590 = vnez %v588
        %vm591 = vnez %v589
        %v592 = vsel %vm590, 16843009, 0
        %v593 = vsel %vm591, 16843009, 0
        %v594 = vunpack.c.0.s8 %v592
        %v595 = vunpack.c.0.s8 %v593
        %vm596 = vcmp.ne.s32.totalorder %v594, 0
        %vm597 = vcmp.ne.s32.totalorder %v595, 0
        %v598 = vsel %vm596, -1e+09, %v583
        %v599 = vsel %vm597, -1e+09, %v586
        %600 = vst.msk [vmem:[%s533] sm:$0xff] %vm552, %v598
        %601 = vst.msk [vmem:[%s533 + $0x8] sm:$0xff] %vm552, %v599
        %v602 = vsel %vm552, %v598, -inf
        %603 = vmax.xlane.f32.xlu0 %v602
        %v604 = vpop.xlane.xlu0 %603
        %v605 = vsel %vm552, %v599, -inf
        %606 = vmax.xlane.f32.xlu0 %v605
        %v607 = vpop.xlane.xlu0 %606
        %v608 = vsub.f32 %v598, %v604
        %v609 = vsub.f32 %v599, %v607
        %v610 = vmul.f32 %v608, 1.442695
        %v611 = vpow.pop %v610
        %v612 = vmul.f32 %v609, 1.442695
        %v613 = vpow.pop %v612
        %v614 = vsel %vm552, %v611, 0.0
        %615 = vadd.xlane.f32.xlu0 %v614
        %v616 = vpop.xlane.xlu0 %615
        %v617 = vsel %vm552, %v613, 0.0
        %618 = vadd.xlane.f32.xlu0 %v617
        %v619 = vpop.xlane.xlu0 %618
        %v620 = vrcp.pop %v616
        %v621 = vmul.f32 %v616, %v620
        %v622 = vsub.f32 1.0, %v621
        %v623 = vmul.f32 %v620, %v622
        %v624 = vadd.f32 %v620, %v623
        %vm625 = vweird.f32 %v616
        %vm626 = vweird.f32 %v620
        %vm627 = vmor %vm625, %vm626
        %v628 = vsel %vm627, %v620, %v624
        %v629 = vand.u32 2147483647, %v616
        %vm630 = vcmp.eq.f32.partialorder %v629, 8.507059e+37
        %v631 = vand.u32 %v616, 2147483648
        %v632 = vor.u32 1.1754944e-38, %v631
        %v633 = vsel %vm630, %v632, %v628
        %v634 = vrcp.pop %v619
        %v635 = vmul.f32 %v619, %v634
        %v636 = vsub.f32 1.0, %v635
        %v637 = vmul.f32 %v634, %v636
        %v638 = vadd.f32 %v634, %v637
        %vm639 = vweird.f32 %v619
        %vm640 = vweird.f32 %v634
        %vm641 = vmor %vm639, %vm640
        %v642 = vsel %vm641, %v634, %v638
        %v643 = vand.u32 2147483647, %v619
        %vm644 = vcmp.eq.f32.partialorder %v643, 8.507059e+37
        %v645 = vand.u32 %v619, 2147483648
        %v646 = vor.u32 1.1754944e-38, %v645
        %v647 = vsel %vm644, %v646, %v642
        %v648 = vmul.f32 %v611, %v633
        %v649 = vmul.f32 %v613, %v647
        %650 = vst.msk [vmem:[%s526] sm:$0xff] %vm552, %v648
        %651 = vst.msk [vmem:[%s526 + $0x8] sm:$0xff] %vm552, %v649
        %v653 = vsel %vm552, %v648, 0
        %v656 = vsel %vm552, %v649, 0
        %658 = vmatpush.msra.mxu0 0.0
        %659 = vmatpush.msra.mxu0 0.0
        %660 = vmatpush.msra.mxu0 0.0
        %661 = vmatpush.msra.mxu0 0.0
        %662 = vmatpush.msra.mxu0 0.0
        %663 = vmatpush.msra.mxu0 0.0
        %664 = vmatpush.msra.mxu0 0.0
        %665 = vmatpush.msra.mxu0 0.0
        %666 = vmatpush.msra.mxu0 0.0
        %667 = vmatpush.msra.mxu0 0.0
        %668 = vmatpush.msra.mxu0 0.0
        %669 = vmatpush.msra.mxu0 0.0
        %670 = vmatpush.msra.mxu0 0.0
        %671 = vmatpush.msra.mxu0 0.0
        %672 = vmatpush.msra.mxu0 %v549
        %673 = vmatpush.msra.mxu0 %v548
        %674 = vmatmul.f32.gmra.mxu0 %v653
        %v675 = vpop.f32.mrf.mxu0
        %v676 = vadd.f32 0.0, %v675
        %677 = vmatmul.f32.gmra.mxu0 %v656
        %v678 = vpop.f32.mrf.mxu0
        %v679 = vadd.f32 0.0, %v678
        %680 = vdwg.mxu0
        %681 = vst.msk [vmem:[%s519] sm:$0xff] %vm552, %v676
        %682 = vst.msk [vmem:[%s519 + $0x8] sm:$0xff] %vm552, %v679
        %s683 = sand.u32 %s207, 1
        %s684 = scalar_lea.sflag [#allocation4], %s683
        %s685 = sand.u32 %s207, 1
        %s686 = smul.addr %s685, 16
        %s687 = scalar_lea.vmem [#allocation11], %s686
        %s688 = sand.u32 %s34, 1
        %s689 = scalar_lea.sflag [#allocation13], %s688
        %s690 = sand.u32 %s237, 1
        %s691 = smul.addr %s690, 16
        %s692 = scalar_lea.vmem [#allocation12], %s691
        %s693 = sand.u32 %s34, 1
        %s694 = scalar_lea.sflag [#allocation13], %s693
        %s695 = sand.u32 %s267, 1
        %s696 = smul.addr %s695, 16
        %s697 = scalar_lea.vmem [#allocation14], %s696
        // Predicated region
        $region61: #{tpu_custom_call.1} parent=39 // pred_check
          %p698 = pneg %p217
        $region62: #{tpu_custom_call.1} parent=39 // pred_check_branch
          %700 = sbr.rel (%p698) target = $region64
        $region63: #{tpu_custom_call.1} parent=39 // pred_region
          %s701 = smul.u32 2, %s40
          %703 = vsyncadd %s684, 0
          %s704 = smul.addr %s41, 2
          %s705 = sadd.s32 %s701, %s704
          %s706 = smul.addr %s39, 8
          %s707 = sadd.s32 %s705, %s706
          %s708 = smul.addr %s707, 8
          %s709 = scalar_lea.hbm %s5, %s708
          %s710 = sshll.u32 %s687, 4
          %s711 = int_to_ptr.vmem [resolvable:$true] %s710
          %s712 = sshll.u32 %s709, 4
          %s713 = int_to_ptr.hbm [resolvable:$true] %s712
          %718 = dma.vmem_to_hbm [thread:$0]  %s711, 256, %s713, %s684, 128, 128, 8
        $region64: #{tpu_custom_call.1} parent=39 // pred_fallthru
          _
        // Predicated region
        $region65: #{tpu_custom_call.1} parent=39 // pred_check
          %p719 = pneg %p247
        $region66: #{tpu_custom_call.1} parent=39 // pred_check_branch
          %721 = sbr.rel (%p719) target = $region68
        $region67: #{tpu_custom_call.1} parent=39 // pred_region
          %s722 = smul.u32 2, %s40
          %724 = vsyncadd %s689, 0
          %s725 = smul.addr %s41, 2
          %s726 = sadd.s32 %s722, %s725
          %s727 = smul.addr %s39, 8
          %s728 = sadd.s32 %s726, %s727
          %s729 = smul.addr %s728, 8
          %s730 = scalar_lea.hbm %s6, %s729
          %s731 = sshll.u32 %s692, 4
          %s732 = int_to_ptr.vmem [resolvable:$true] %s731
          %s733 = sshll.u32 %s730, 4
          %s734 = int_to_ptr.hbm [resolvable:$true] %s733
          %739 = dma.vmem_to_hbm [thread:$0]  %s732, 256, %s734, %s689, 128, 128, 8
        $region68: #{tpu_custom_call.1} parent=39 // pred_fallthru
          _
        // Predicated region
        $region69: #{tpu_custom_call.1} parent=39 // pred_check
          %p740 = pneg %p277
        $region70: #{tpu_custom_call.1} parent=39 // pred_check_branch
          %742 = sbr.rel (%p740) target = $region72
        $region71: #{tpu_custom_call.1} parent=39 // pred_region
          %s743 = smul.u32 2, %s40
          %745 = vsyncadd %s694, 0
          %s746 = smul.addr %s41, 2
          %s747 = sadd.s32 %s743, %s746
          %s748 = smul.addr %s39, 8
          %s749 = sadd.s32 %s747, %s748
          %s750 = smul.addr %s749, 8
          %s751 = scalar_lea.hbm %s7, %s750
          %s752 = sshll.u32 %s697, 4
          %s753 = int_to_ptr.vmem [resolvable:$true] %s752
          %s754 = sshll.u32 %s751, 4
          %s755 = int_to_ptr.hbm [resolvable:$true] %s754
          %760 = dma.vmem_to_hbm [thread:$0]  %s753, 256, %s755, %s694, 128, 128, 8
        $region72: #{tpu_custom_call.1} parent=39 // pred_fallthru
          _
      $region40: #{tpu_custom_call.1} parent=5 // pred_fallthru
        _
      %p761 = scmp.le.s32.totalorder 2, %s29
      // Predicated region
      $region73: #{tpu_custom_call.1} parent=5 // pred_check
        %p762 = pneg %p761
      $region74: #{tpu_custom_call.1} parent=5 // pred_check_branch
        %764 = sbr.rel (%p762) target = $region76
      $region75: #{tpu_custom_call.1} parent=5 // pred_region
        %s765 = ssub.s32 %s29, 2
        // Predicated region
        $region77: #{tpu_custom_call.1} parent=75 // pred_check
          %p766 = pneg %p223
        $region78: #{tpu_custom_call.1} parent=75 // pred_check_branch
          %768 = sbr.rel (%p766) target = $region80
        $region79: #{tpu_custom_call.1} parent=75 // pred_region
          %s769 = sand.u32 %s208, 1
          %s770 = scalar_lea.sflag [#allocation4], %s769
          %s771 = sand.u32 %s208, 1
          %s772 = smul.addr %s771, 16
          %s773 = scalar_lea.vmem [#allocation11], %s772
          %775 = dma.done %s770, 256
        $region80: #{tpu_custom_call.1} parent=75 // pred_fallthru
          _
        // Predicated region
        $region81: #{tpu_custom_call.1} parent=75 // pred_check
          %p776 = pneg %p253
        $region82: #{tpu_custom_call.1} parent=75 // pred_check_branch
          %778 = sbr.rel (%p776) target = $region84
        $region83: #{tpu_custom_call.1} parent=75 // pred_region
          %s779 = sand.u32 %s35, 1
          %s780 = scalar_lea.sflag [#allocation13], %s779
          %s781 = sand.u32 %s238, 1
          %s782 = smul.addr %s781, 16
          %s783 = scalar_lea.vmem [#allocation12], %s782
          %785 = dma.done %s780, 256
        $region84: #{tpu_custom_call.1} parent=75 // pred_fallthru
          _
        // Predicated region
        $region85: #{tpu_custom_call.1} parent=75 // pred_check
          %p786 = pneg %p283
        $region86: #{tpu_custom_call.1} parent=75 // pred_check_branch
          %788 = sbr.rel (%p786) target = $region88
        $region87: #{tpu_custom_call.1} parent=75 // pred_region
          %s789 = sand.u32 %s35, 1
          %s790 = scalar_lea.sflag [#allocation13], %s789
          %s791 = sand.u32 %s268, 1
          %s792 = smul.addr %s791, 16
          %s793 = scalar_lea.vmem [#allocation14], %s792
          %795 = dma.done %s790, 256
        $region88: #{tpu_custom_call.1} parent=75 // pred_fallthru
          _
      $region76: #{tpu_custom_call.1} parent=5 // pred_fallthru
        _
    $region6: #{tpu_custom_call.1} parent=1 // loop_footer
      %s33 = sadd.s32 1, %s29
    $region7: #{tpu_custom_call.1} parent=1 // loop_footer_branch
      %28 = sbr.rel target = $region3
    $region8: #{tpu_custom_call.1} parent=1 // loop_exit
      _
    %796 = vsyncpa [#allocation3], 1
    %s797 = scalar_lea.sflag [#allocation3], 1
    %798 = vsyncpa %s797, 1
    %799 = vsyncpa [#allocation6], 1
    %s800 = scalar_lea.sflag [#allocation6], 1
    %801 = vsyncpa %s800, 1
    %802 = vsyncpa [#allocation9], 1
    %s803 = scalar_lea.sflag [#allocation9], 1
    %804 = vsyncpa %s803, 1
    %805 = vsyncpa [#allocation4], 1
    %s806 = scalar_lea.sflag [#allocation4], 1
    %807 = vsyncpa %s806, 1
    %808 = vsyncpa [#allocation13], 1
    %s809 = scalar_lea.sflag [#allocation13], 1
    %810 = vsyncpa %s809, 1

</llo_original>
